<compile_context>
chip_gen: v6e
topology: v6e:2x2x1
jax: 0.10.0
libtpu: 0.0.40
codegen_flags: <defaults>
</compile_context>

<pallas_src>
import jax
import jax.numpy as jnp
from jax.experimental import pallas as pl
from jax.experimental.pallas import tpu as pltpu

KERNEL = 3                                # MaxPool2d(kernel_size=3) -> stride 3
_VMEM_WORKING_SET = 40 * 1024 * 1024      # target double-buffered working set
_VMEM_LIMIT = 48 * 1024 * 1024            # <= v7x 64 MiB/core physical VMEM
_MAX_B_BLOCK = 1024                       # bound per-step unroll / program size


def _maxpool_h_kernel(x_ref, o_ref):
    """Height 3:1 fold.  x_ref: (B_blk, H, W)   o_ref: (B_blk, Ho, W)."""
    ho = o_ref.shape[1]
    # Three sublane-strided taps (stride on a non-minor dim) + pairwise max
    # tree, then a single dense store of the whole block.
    t0 = x_ref[:, pl.ds(0, ho, stride=KERNEL), :]
    t1 = x_ref[:, pl.ds(1, ho, stride=KERNEL), :]
    t2 = x_ref[:, pl.ds(2, ho, stride=KERNEL), :]
    o_ref[...] = jnp.maximum(jnp.maximum(t0, t1), t2)


def _round_up(n, m):
    return ((n + m - 1) // m) * m


def _pick_b_block(b, per_b_vmem_bytes):
    """N*C block size: as large as the VMEM budget allows, but at least two
    blocks when possible (v7x megacore sharding) and preferably a divisor of
    `b` so the last block is not ragged."""
    cap = max(1, _VMEM_WORKING_SET // per_b_vmem_bytes)
    cap = min(cap, _MAX_B_BLOCK, b)
    if b >= 2:
        cap = min(cap, pl.cdiv(b, 2))
    cap = max(cap, 1)
    for d in range(cap, 0, -1):           # prefer a clean divisor near the cap
        if b % d == 0:
            if 2 * d >= cap:
                return d
            break
    return cap


@jax.jit
def hula_forward(x):
    """x: (N, C, H, W) float32 -> (N, C, Ho, Wo).  MaxPool2d(3, stride=3, floor)."""
    N, C, H, W = x.shape
    k = KERNEL
    Ho = (H - k) // k + 1
    Wo = (W - k) // k + 1
    if Ho < 1 or Wo < 1:
        raise ValueError("spatial dims must be >= kernel_size (3) for floor mode")
    B = N * C
    bytes_el = x.dtype.itemsize

    xb = x.reshape(B, H, W)               # free view of NCHW — no HBM pass

    # Double-buffered (input block + output block), accounting for the (8,128)
    # VMEM tile padding of the last two dims.
    per_b_vmem = 2 * bytes_el * (
        _round_up(H, 8) * _round_up(W, 128) + _round_up(Ho, 8) * _round_up(W, 128)
    )
    B_blk = _pick_b_block(B, per_b_vmem)
    grid = (pl.cdiv(B, B_blk),)

    cost = pl.CostEstimate(
        flops=2 * B * Ho * W,             # two maxima per kept element
        transcendentals=0,
        bytes_accessed=bytes_el * (B * H * W + B * Ho * W),
    )

    hmax = pl.pallas_call(
        _maxpool_h_kernel,
        out_shape=jax.ShapeDtypeStruct((B, Ho, W), x.dtype),
        grid_spec=pl.GridSpec(
            grid=grid,
            in_specs=[pl.BlockSpec((B_blk, H, W), lambda b: (b, 0, 0))],
            out_specs=pl.BlockSpec((B_blk, Ho, W), lambda b: (b, 0, 0)),
        ),
        compiler_params=pltpu.CompilerParams(
            dimension_semantics=("parallel",),
            vmem_limit_bytes=_VMEM_LIMIT,
        ),
        cost_estimate=cost,
    )(xb)

    # Width 3:1 fold on the 3x-reduced intermediate (small fused XLA epilogue),
    # then a free reshape back to NCHW — no output transpose.
    out = jnp.max(hmax[:, :, : k * Wo].reshape(B, Ho, Wo, k), axis=-1)
    return out.reshape(N, C, Ho, Wo)


def _reference(x):
    """Pure-JAX reference for MaxPool2d(3, stride=3, ceil_mode=False)."""
    N, C, H, W = x.shape
    k = KERNEL
    Ho = (H - k) // k + 1
    Wo = (W - k) // k + 1
    xc = x[:, :, : Ho * k, : Wo * k].reshape(N, C, Ho, k, Wo, k)
    return xc.max(axis=(3, 5))


if __name__ == "__main__":
    key = jax.random.PRNGKey(0)
    # Small NCHW image input consistent with the module's forward.
    x = jax.random.normal(key, (2, 4, 16, 16), dtype=jnp.float32)

    y = jax.block_until_ready(hula_forward(x))

    y_ref = _reference(x)
    assert y.shape == (2, 4, 5, 5), y.shape
    assert jnp.allclose(y, y_ref), "Pallas maxpool mismatch vs reference"

    print("KERNEL_OK")
</pallas_src>

<mosaic_0001>
module attributes {stable_mosaic.version = 11 : i64} {
  func.func @_maxpool_h_kernel(%arg0: i32, %arg1: memref<4x16x16xf32, #tpu.memory_space<vmem>>, %arg2: memref<4x5x16xf32, #tpu.memory_space<vmem>>) attributes {dimension_semantics = [#tpu.dimension_semantics<parallel>], iteration_bounds = array<i64: 2>, scalar_prefetch = 0 : i64, scratch_operands = 0 : i64, tpu.core_type = #tpu.core_type<tc>, window_params = [{transform_indices = @transform_0, window_bounds = array<i64: 4, 16, 16>}, {transform_indices = @transform_1, window_bounds = array<i64: 4, 5, 16>}]} {
    %c0 = arith.constant 0 : index
    %c0_0 = arith.constant 0 : index
    %c0_1 = arith.constant 0 : index
    %0 = tpu.strided_load %arg1[%c0, %c0_0, %c0_1] {strides = array<i32: 1, 3, 1>} : memref<4x16x16xf32, #tpu.memory_space<vmem>>, vector<4x5x16xf32>
    %c0_2 = arith.constant 0 : index
    %c1 = arith.constant 1 : index
    %c0_3 = arith.constant 0 : index
    %1 = tpu.strided_load %arg1[%c0_2, %c1, %c0_3] {strides = array<i32: 1, 3, 1>} : memref<4x16x16xf32, #tpu.memory_space<vmem>>, vector<4x5x16xf32>
    %c0_4 = arith.constant 0 : index
    %c2 = arith.constant 2 : index
    %c0_5 = arith.constant 0 : index
    %2 = tpu.strided_load %arg1[%c0_4, %c2, %c0_5] {strides = array<i32: 1, 3, 1>} : memref<4x16x16xf32, #tpu.memory_space<vmem>>, vector<4x5x16xf32>
    %3 = arith.maximumf %0, %1 : vector<4x5x16xf32>
    %4 = arith.maximumf %3, %2 : vector<4x5x16xf32>
    %c0_6 = arith.constant 0 : index
    %c0_7 = arith.constant 0 : index
    %c0_8 = arith.constant 0 : index
    %5 = vector.load %arg2[%c0_6, %c0_7, %c0_8] : memref<4x5x16xf32, #tpu.memory_space<vmem>>, vector<4x5x16xf32>
    tpu.vector_store %arg2[%c0_6, %c0_7, %c0_8], %4 {strides = array<i32>} : memref<4x5x16xf32, #tpu.memory_space<vmem>>, vector<4x5x16xf32>,
    return
  }
  func.func @transform_0(%arg0: i32) -> (i32, i32, i32) {
    %c0_i32 = arith.constant 0 : i32
    %c0_i32_0 = arith.constant 0 : i32
    %c0_i32_1 = arith.constant 0 : i32
    return %arg0, %c0_i32, %c0_i32_0 : i32, i32, i32
  }
  func.func @transform_1(%arg0: i32) -> (i32, i32, i32) {
    %c0_i32 = arith.constant 0 : i32
    %c0_i32_0 = arith.constant 0 : i32
    %c0_i32_1 = arith.constant 0 : i32
    return %arg0, %c0_i32, %c0_i32_0 : i32, i32, i32
  }
}

</mosaic_0001>

<llo_original>
// kernel: hula_forward.1
$region0: #{hula_forward.1}
  #allocation0 [shape = 'u32[]', space=smem, size = 0x4, offset = 0x4, fixed_abs, tag = 'smem constant byte address 0x4 - core index']
  #allocation1 [shape = 'u32[144,128]{1,0:T(1,128)}', space=vmem, size = 0x12000, scoped, tag = 'internal scratch']
  %s0 = inlined_call_operand.hbm [shape: f32[8,16,16], index: 0, kind: input, shape index: {}]
  %s1 = inlined_call_operand.vmem [shape: f32[8,5,16], index: 1, kind: output, shape index: {}]
  %s2 = sld [smem:[#allocation0]]
  $region41: #{hula_forward.1} parent=0
    _
  %s4 = ssub.s32 1, %s2
  %s5 = scalar_select 0, %s4, %s2
  $region1: #{hula_forward.1} parent=0
    #allocation2 [shape = 'u8[65536]{0}', space=vmem, size = 0x10000, scoped, tag = 'input window, operand 0']
    #allocation3 [shape = 's32[2]{0}', space=sflag, size = 0x8, scoped, tag = 'scoped memory for hula_forward.1']
    %6 = vsyncpa [#allocation3], 0
    %s7 = scalar_lea.sflag [#allocation3], 1
    %8 = vsyncpa %s7, 0
    loop: start=0, step=1, limit=4
    $region2: #{hula_forward.1} parent=1 // loop_pre_header
      _
    $region3: #{hula_forward.1} parent=1 // loop_header
      %s10 = sphi 0, %s14
      %p11 = scmp.ge.s32.totalorder %s10, 4
      %s20 = sphi 0, %s22
      %s23 = sphi 0, %s20
      %s24 = sphi 0, %s23
      %s40 = sphi 0, %s24
      %s46 = sphi 0, %s48
      %s49 = sphi 0, %s46
      %s50 = sphi 0, %s49
      %s66 = sphi 0, %s50
    $region4: #{hula_forward.1} parent=1 // loop_header_branch
      %13 = sbr.rel (%p11) target = $region8
    $region5: #{hula_forward.1} parent=1 // loop_body
      %s15 = ssub.s32 %s10, 1
      %s16 = ssub.s32 %s10, 2
      %s17 = sadd.s32 %s10, 1
      %s18 = ssub.s32 %s10, %s17
      %p19 = scmp.eq.s32.totalorder %s18, 0
      %s21 = sadd.s32 %s20, 1
      %s22 = scalar_select %p19, %s20, %s21
      %p25 = pneg %p19
      %p26 = scmp.eq.s32.totalorder %s10, 1
      %p27 = por %p25, %p26
      %p28 = scmp.ne.s32.totalorder %s20, %s23
      %p29 = scmp.eq.s32.totalorder %s10, 0
      %p30 = por %p28, %p29
      %p31 = scmp.ne.s32.totalorder %s20, %s23
      %p32 = scmp.eq.s32.totalorder %s15, 1
      %p33 = por %p31, %p32
      %p34 = scmp.ne.s32.totalorder %s23, %s24
      %p35 = scmp.eq.s32.totalorder %s15, 0
      %p36 = por %p34, %p35
      %p37 = scmp.ne.s32.totalorder %s23, %s24
      %p38 = scmp.eq.s32.totalorder %s16, 1
      %p39 = por %p37, %p38
      %p41 = scmp.ne.s32.totalorder %s24, %s40
      %p42 = scmp.eq.s32.totalorder %s16, 0
      %p43 = por %p41, %p42
      %s44 = ssub.s32 %s10, %s17
      %p45 = scmp.eq.s32.totalorder %s44, 0
      %s47 = sadd.s32 %s46, 1
      %s48 = scalar_select %p45, %s46, %s47
      %p51 = pneg %p45
      %p52 = scmp.eq.s32.totalorder %s10, 1
      %p53 = por %p51, %p52
      %p54 = scmp.ne.s32.totalorder %s46, %s49
      %p55 = scmp.eq.s32.totalorder %s10, 0
      %p56 = por %p54, %p55
      %p57 = scmp.ne.s32.totalorder %s46, %s49
      %p58 = scmp.eq.s32.totalorder %s15, 1
      %p59 = por %p57, %p58
      %p60 = scmp.ne.s32.totalorder %s49, %s50
      %p61 = scmp.eq.s32.totalorder %s15, 0
      %p62 = por %p60, %p61
      %p63 = scmp.ne.s32.totalorder %s49, %s50
      %p64 = scmp.eq.s32.totalorder %s16, 1
      %p65 = por %p63, %p64
      %p67 = scmp.ne.s32.totalorder %s50, %s66
      %p68 = scmp.eq.s32.totalorder %s16, 0
      %p69 = por %p67, %p68
      %p70 = scmp.le.s32.totalorder 1, %s10
      %p71 = scmp.lt.s32.totalorder %s10, 3
      %p72 = pnand %p70, %p71
      %p73 = pneg %p72
      // Predicated region
      $region9: #{hula_forward.1} parent=5 // pred_check
        _
      $region10: #{hula_forward.1} parent=5 // pred_check_branch
        %75 = sbr.rel (%p72) target = $region12
      $region11: #{hula_forward.1} parent=5 // pred_region
        %s76 = ssub.s32 %s10, 1
      $region12: #{hula_forward.1} parent=5 // pred_fallthru
        _
      %p77 = scmp.lt.s32.totalorder %s10, 2
      // Predicated region
      $region13: #{hula_forward.1} parent=5 // pred_check
        %p78 = pneg %p77
      $region14: #{hula_forward.1} parent=5 // pred_check_branch
        %80 = sbr.rel (%p78) target = $region16
      $region15: #{hula_forward.1} parent=5 // pred_region
        // Predicated region
        $region17: #{hula_forward.1} parent=15 // pred_check
          %p81 = pneg %p30
        $region18: #{hula_forward.1} parent=15 // pred_check_branch
          %83 = sbr.rel (%p81) target = $region20
        $region19: #{hula_forward.1} parent=15 // pred_region
          %s84 = sand.u32 %s20, 1
          %s85 = scalar_lea.sflag [#allocation3], %s84
          %s86 = sand.u32 %s20, 1
          %s87 = smul.addr %s86, 64
          %s88 = scalar_lea.vmem [#allocation2], %s87
          %s89 = smul.u32 4, %s10
          %s91 = ssub.s32 1024, 1024
          %92 = vsyncadd %s85, %s91
          %s93 = smul.addr %s89, 2
          %s94 = smul.addr %s93, 128
          %s95 = scalar_lea.hbm %s0, %s94
          %s96 = sshll.u32 %s88, 4
          %s97 = int_to_ptr.vmem [resolvable:$true] %s96
          %102 = dma.hbm_to_vmem [thread:$0]  %s95, 1024, %s97, %s85, 128, 128, 8
        $region20: #{hula_forward.1} parent=15 // pred_fallthru
          _
      $region16: #{hula_forward.1} parent=5 // pred_fallthru
        _
      %p103 = scmp.le.s32.totalorder 1, %s10
      %p104 = scmp.lt.s32.totalorder %s10, 3
      %p105 = pnand %p103, %p104
      %p106 = pneg %p105
      // Predicated region
      $region21: #{hula_forward.1} parent=5 // pred_check
        _
      $region22: #{hula_forward.1} parent=5 // pred_check_branch
        %108 = sbr.rel (%p105) target = $region24
      $region23: #{hula_forward.1} parent=5 // pred_region
        %s109 = ssub.s32 %s10, 1
        %s110 = sand.u32 %s23, 1
        %s111 = scalar_lea.sflag [#allocation3], %s110
        %s112 = sand.u32 %s23, 1
        %s113 = smul.addr %s112, 64
        %s114 = scalar_lea.vmem [#allocation2], %s113
        // Predicated region
        $region25: #{hula_forward.1} parent=23 // pred_check
          %p115 = pneg %p36
        $region26: #{hula_forward.1} parent=23 // pred_check_branch
          %117 = sbr.rel (%p115) target = $region28
        $region27: #{hula_forward.1} parent=23 // pred_region
          %118 = dma.done %s111, 1024
        $region28: #{hula_forward.1} parent=23 // pred_fallthru
          _
        %s119 = sand.u32 %s23, 1
        %s120 = scalar_lea.sflag [#allocation3], %s119
        %s121 = sand.u32 %s23, 1
        %s122 = smul.addr %s121, 64
        %s123 = scalar_lea.vmem [#allocation2], %s122
        %p124 = pneg %p36
        %p125 = pneg %p33
        %p126 = pneg %p62
        %p127 = pneg %p59
        %s128 = smul.u32 4, %s15
        %p129 = scmp.lt.s32.totalorder %s128, 7
        %s130 = scalar_select %p129, %s128, 7
        %s131 = smul.addr %s130, 8
        %s132 = scalar_lea.vmem %s1, %s131
        %s133 = smul.u32 4, %s15
        %s134 = smul.u32 4, %s15
        %p135 = scmp.lt.s32.totalorder %s134, 7
        %s136 = scalar_select %p135, %s134, 7
        %s137 = smul.addr %s136, 8
        %s138 = scalar_lea.vmem %s1, %s137
        %s139 = smul.u32 4, %s15
        %v140 = vld [vmem:[%s114] ss:$3 sm:$0x1f]
        %s141 = scalar_lea.vmem %s114, 16 [#allocation2]
        %v142 = vld [vmem:[%s141] ss:$3 sm:$0x1f]
        %s143 = scalar_lea.vmem %s114, 32 [#allocation2]
        %v144 = vld [vmem:[%s143] ss:$3 sm:$0x1f]
        %s145 = scalar_lea.vmem %s114, 48 [#allocation2]
        %v146 = vld [vmem:[%s145] ss:$3 sm:$0x1f]
        %s147 = scalar_lea.vmem %s114, 1 [#allocation2]
        %v148 = vld [vmem:[%s147] ss:$3 sm:$0x1f]
        %s149 = scalar_lea.vmem %s114, 17 [#allocation2]
        %v150 = vld [vmem:[%s149] ss:$3 sm:$0x1f]
        %s151 = scalar_lea.vmem %s114, 33 [#allocation2]
        %v152 = vld [vmem:[%s151] ss:$3 sm:$0x1f]
        %s153 = scalar_lea.vmem %s114, 49 [#allocation2]
        %v154 = vld [vmem:[%s153] ss:$3 sm:$0x1f]
        %s155 = scalar_lea.vmem %s114, 2 [#allocation2]
        %v156 = vld [vmem:[%s155] ss:$3 sm:$0x1f]
        %s157 = scalar_lea.vmem %s114, 18 [#allocation2]
        %v158 = vld [vmem:[%s157] ss:$3 sm:$0x1f]
        %s159 = scalar_lea.vmem %s114, 34 [#allocation2]
        %v160 = vld [vmem:[%s159] ss:$3 sm:$0x1f]
        %s161 = scalar_lea.vmem %s114, 50 [#allocation2]
        %v162 = vld [vmem:[%s161] ss:$3 sm:$0x1f]
        %v163 = vmax.f32 %v140, %v148
        %v164 = vmax.f32 %v142, %v150
        %v165 = vmax.f32 %v144, %v152
        %v166 = vmax.f32 %v146, %v154
        %v167 = vmax.f32 %v163, %v156
        %v168 = vmax.f32 %v164, %v158
        %v169 = vmax.f32 %v165, %v160
        %v170 = vmax.f32 %v166, %v162
        %vm171 = vcmask 126976
        %172 = vst.msk [vmem:[%s138] sm:$0x1f] %vm171, %v167
        %173 = vst.msk [vmem:[%s138 + $0x8] sm:$0x1f] %vm171, %v168
        %174 = vst.msk [vmem:[%s138 + $0x10] sm:$0x1f] %vm171, %v169
        %175 = vst.msk [vmem:[%s138 + $0x18] sm:$0x1f] %vm171, %v170
        %s176 = smul.u32 4, %s15
        %p177 = scmp.lt.s32.totalorder %s176, 7
        %s178 = scalar_select %p177, %s176, 7
        %s179 = smul.addr %s178, 8
        %s180 = scalar_lea.vmem %s1, %s179
        // Predicated region
        $region29: #{hula_forward.1} parent=23 // pred_check
          %p181 = pneg %p59
        $region30: #{hula_forward.1} parent=23 // pred_check_branch
          %183 = sbr.rel (%p181) target = $region32
        $region31: #{hula_forward.1} parent=23 // pred_region
          %s184 = smul.u32 4, %s15
        $region32: #{hula_forward.1} parent=23 // pred_fallthru
          _
      $region24: #{hula_forward.1} parent=5 // pred_fallthru
        _
      %p185 = scmp.le.s32.totalorder 2, %s10
      // Predicated region
      $region33: #{hula_forward.1} parent=5 // pred_check
        %p186 = pneg %p185
      $region34: #{hula_forward.1} parent=5 // pred_check_branch
        %188 = sbr.rel (%p186) target = $region36
      $region35: #{hula_forward.1} parent=5 // pred_region
        %s189 = ssub.s32 %s10, 2
        // Predicated region
        $region37: #{hula_forward.1} parent=35 // pred_check
          %p190 = pneg %p65
        $region38: #{hula_forward.1} parent=35 // pred_check_branch
          %192 = sbr.rel (%p190) target = $region40
        $region39: #{hula_forward.1} parent=35 // pred_region
          %s193 = smul.u32 4, %s16
          %p194 = scmp.lt.s32.totalorder %s193, 7
          %s195 = scalar_select %p194, %s193, 7
          %s196 = smul.addr %s195, 8
          %s197 = scalar_lea.vmem %s1, %s196
        $region40: #{hula_forward.1} parent=35 // pred_fallthru
          _
      $region36: #{hula_forward.1} parent=5 // pred_fallthru
        _
    $region6: #{hula_forward.1} parent=1 // loop_footer
      %s14 = sadd.s32 1, %s10
    $region7: #{hula_forward.1} parent=1 // loop_footer_branch
      %9 = sbr.rel target = $region3
    $region8: #{hula_forward.1} parent=1 // loop_exit
      _
    %198 = vsyncpa [#allocation3], 1
    %s199 = scalar_lea.sflag [#allocation3], 1
    %200 = vsyncpa %s199, 1

</llo_original>
